<compile_context>
chip_gen: v7x
topology: tpu7x:2x2x1
jax: 0.10.0
libtpu: 0.0.40
codegen_flags: <defaults>
</compile_context>

<pallas_src>
import jax
import jax.numpy as jnp
from jax import lax
from jax.experimental import pallas as pl
from jax.experimental.pallas import tpu as pltpu


def _make_rnn_kernel(S, B):
    """Builds the kernel with static sequence length S and batch B baked in."""

    def kernel(tok_ref, emb_ref, wih_ref, whh_ref, b_ref, wfc_ref, bfc_ref, out_ref):
        V = emb_ref.shape[0]
        H = whh_ref.shape[0]

        # ---- embedding lookup in-kernel: one-hot (S*B, V) @ table (V, E) on the MXU ----
        # (padding_idx row of the table is pre-zeroed by the caller, so pad tokens
        #  embed to zero exactly like nn.Embedding(padding_idx=...).)
        tok = tok_ref[...]                                            # (S*B, 1) int32, time-major
        vocab_iota = lax.broadcasted_iota(jnp.int32, (S * B, V), 1)   # (S*B, V)
        one_hot = (vocab_iota == tok).astype(jnp.float32)
        x = jnp.dot(one_hot, emb_ref[...],
                    preferred_element_type=jnp.float32)               # (S*B, E)

        # ---- hoisted input projection: one MXU pass over every time step ----
        xw = jnp.dot(x, wih_ref[...],
                     preferred_element_type=jnp.float32) + b_ref[...]  # (S*B, H)

        whh = whh_ref[...]
        h = jnp.zeros((B, H), jnp.float32)
        acc = jnp.zeros((B, H), jnp.float32)

        # ---- recurrence, fully unrolled (static trip count S) ----
        for t in range(S):
            h = jnp.tanh(xw[t * B:(t + 1) * B, :]
                         + jnp.dot(h, whh, preferred_element_type=jnp.float32))
            acc = acc + h                                             # running sum for mean pooling

        pooled = acc * (1.0 / S)                                      # mean over sequence
        out_ref[...] = (jnp.dot(pooled, wfc_ref[...],
                                preferred_element_type=jnp.float32)
                        + bfc_ref[...]).astype(out_ref.dtype)

    return kernel


def baseline_rnn_forward(tokens, emb_w, w_ih, w_hh, b_ih, b_hh, fc_w, fc_b):
    """tokens: (B, S) int32.  Returns (B, output_size) float32."""
    B, S = tokens.shape
    V, E = emb_w.shape
    H = w_hh.shape[0]
    O = fc_w.shape[0]

    # Time-major flat tokens: [t0 b0, t0 b1, t1 b0, ...].  Cheap int32 op; the big
    # float gather/transpose of the old wrapper is gone (now done in-kernel).
    tok_tm = tokens.T.reshape(S * B, 1).astype(jnp.int32)

    # Pre-transpose weights so every in-kernel matmul is a plain row-major dot.
    wih_t = w_ih.T                                   # (E, H)
    whh_t = w_hh.T                                   # (H, H)
    b = (b_ih + b_hh).reshape(1, H)                  # (1, H)
    wfc_t = fc_w.T                                   # (H, O)
    bfc = fc_b.reshape(1, O)                         # (1, O)

    grid_spec = pltpu.PrefetchScalarGridSpec(
        num_scalar_prefetch=0,
        grid=(1,),                                   # single invocation: everything fits VMEM
        in_specs=[
            pl.BlockSpec((S * B, 1), lambda i: (0, 0)),   # time-major tokens
            pl.BlockSpec((V, E), lambda i: (0, 0)),       # embedding table (pad row zeroed)
            pl.BlockSpec((E, H), lambda i: (0, 0)),       # W_ih^T
            pl.BlockSpec((H, H), lambda i: (0, 0)),       # W_hh^T
            pl.BlockSpec((1, H), lambda i: (0, 0)),       # b_ih + b_hh
            pl.BlockSpec((H, O), lambda i: (0, 0)),       # fc weight^T
            pl.BlockSpec((1, O), lambda i: (0, 0)),       # fc bias
        ],
        out_specs=pl.BlockSpec((B, O), lambda i: (0, 0)),
    )

    return pl.pallas_call(
        _make_rnn_kernel(S, B),
        out_shape=jax.ShapeDtypeStruct((B, O), jnp.float32),
        grid_spec=grid_spec,
        compiler_params=pltpu.CompilerParams(
            dimension_semantics=("arbitrary",),
        ),
    )(tok_tm, emb_w, wih_t, whh_t, b, wfc_t, bfc)


def _reference(tokens, emb_w, w_ih, w_hh, b_ih, b_hh, fc_w, fc_b):
    """Pure-JAX reference matching the PyTorch module (rnn_type='rnn', average pooling)."""
    x = emb_w[tokens]                                # (B, S, E) — exact gather
    B, S, E = x.shape
    H = w_hh.shape[0]
    h0 = jnp.zeros((B, H), jnp.float32)

    def step(h, x_t):
        h_new = jnp.tanh(x_t @ w_ih.T + b_ih + h @ w_hh.T + b_hh)
        return h_new, h_new

    _, hs = lax.scan(step, h0, jnp.transpose(x, (1, 0, 2)))
    pooled = jnp.mean(hs, axis=0)                    # (B, H)
    return pooled @ fc_w.T + fc_b


if __name__ == "__main__":
    # Small shapes consistent with the module
    B, S = 2, 8
    VOCAB, PAD = 30, 25
    EMB, HID, OUT = 32, 32, 8

    key = jax.random.PRNGKey(0)
    k_tok, k_emb, k_wih, k_whh, k_bih, k_bhh, k_fcw, k_fcb = jax.random.split(key, 8)

    tokens = jax.random.randint(k_tok, (B, S), 0, VOCAB, dtype=jnp.int32)

    # Deterministic parameter init (PyTorch-style uniform ranges)
    emb_w = jax.random.normal(k_emb, (VOCAB, EMB), jnp.float32)
    emb_w = emb_w.at[PAD].set(0.0)                   # padding_idx row is zero
    bound = 1.0 / (HID ** 0.5)
    w_ih = jax.random.uniform(k_wih, (HID, EMB), jnp.float32, -bound, bound)
    w_hh = jax.random.uniform(k_whh, (HID, HID), jnp.float32, -bound, bound)
    b_ih = jax.random.uniform(k_bih, (HID,), jnp.float32, -bound, bound)
    b_hh = jax.random.uniform(k_bhh, (HID,), jnp.float32, -bound, bound)
    fbound = 1.0 / (HID ** 0.5)
    fc_w = jax.random.uniform(k_fcw, (OUT, HID), jnp.float32, -fbound, fbound)
    fc_b = jax.random.uniform(k_fcb, (OUT,), jnp.float32, -fbound, fbound)

    out = baseline_rnn_forward(tokens, emb_w, w_ih, w_hh, b_ih, b_hh, fc_w, fc_b)
    out = jax.block_until_ready(out)

    ref = _reference(tokens, emb_w, w_ih, w_hh, b_ih, b_hh, fc_w, fc_b)
    assert out.shape == (B, OUT)
    assert jnp.allclose(out, ref, atol=1e-4, rtol=1e-4), "mismatch vs JAX reference"
    print("KERNEL_OK")
</pallas_src>

<mosaic_0001>
module attributes {stable_mosaic.version = 11 : i64} {
  func.func @kernel(%arg0: i32, %arg1: memref<16x1xi32, #tpu.memory_space<vmem>>, %arg2: memref<30x32xf32, #tpu.memory_space<vmem>>, %arg3: memref<32x32xf32, #tpu.memory_space<vmem>>, %arg4: memref<32x32xf32, #tpu.memory_space<vmem>>, %arg5: memref<1x32xf32, #tpu.memory_space<vmem>>, %arg6: memref<32x8xf32, #tpu.memory_space<vmem>>, %arg7: memref<1x8xf32, #tpu.memory_space<vmem>>, %arg8: memref<2x8xf32, #tpu.memory_space<vmem>>) attributes {dimension_semantics = [#tpu.dimension_semantics<arbitrary>], iteration_bounds = array<i64: 1>, scalar_prefetch = 0 : i64, scratch_operands = 0 : i64, tpu.core_type = #tpu.core_type<tc>, window_params = [{pipeline_mode = #tpu.pipeline_mode<synchronous>, transform_indices = @transform_0, window_bounds = array<i64: 16, 1>}, {pipeline_mode = #tpu.pipeline_mode<synchronous>, transform_indices = @transform_1, window_bounds = array<i64: 30, 32>}, {pipeline_mode = #tpu.pipeline_mode<synchronous>, transform_indices = @transform_2, window_bounds = array<i64: 32, 32>}, {pipeline_mode = #tpu.pipeline_mode<synchronous>, transform_indices = @transform_3, window_bounds = array<i64: 32, 32>}, {pipeline_mode = #tpu.pipeline_mode<synchronous>, transform_indices = @transform_4, window_bounds = array<i64: 1, 32>}, {pipeline_mode = #tpu.pipeline_mode<synchronous>, transform_indices = @transform_5, window_bounds = array<i64: 32, 8>}, {pipeline_mode = #tpu.pipeline_mode<synchronous>, transform_indices = @transform_6, window_bounds = array<i64: 1, 8>}, {pipeline_mode = #tpu.pipeline_mode<synchronous>, transform_indices = @transform_7, window_bounds = array<i64: 2, 8>}]} {
    %c0 = arith.constant 0 : index
    %c0_0 = arith.constant 0 : index
    %0 = vector.load %arg1[%c0, %c0_0] : memref<16x1xi32, #tpu.memory_space<vmem>>, vector<16x1xi32>
    %1 = tpu.iota {dimensions = array<i32: 1>} : vector<16x30xi32>
    %2 = vector.broadcast %0 : vector<16x1xi32> to vector<16x30xi32>
    %3 = arith.cmpi eq, %1, %2 : vector<16x30xi32>
    %4 = arith.extui %3 : vector<16x30xi1> to vector<16x30xi32>
    %5 = arith.sitofp %4 : vector<16x30xi32> to vector<16x30xf32>
    %c0_1 = arith.constant 0 : index
    %c0_2 = arith.constant 0 : index
    %6 = vector.load %arg2[%c0_1, %c0_2] : memref<30x32xf32, #tpu.memory_space<vmem>>, vector<30x32xf32>
    %cst = arith.constant dense<0.000000e+00> : vector<16x32xf32>
    %7 = tpu.matmul %5, %6, %cst {dimension_numbers = #tpu.dot_dimension_numbers<[1], [0], [0], [1], [0, 0, 1, 1], [], []>} : vector<16x30xf32>, vector<30x32xf32>, vector<16x32xf32> -> vector<16x32xf32>
    %c0_3 = arith.constant 0 : index
    %c0_4 = arith.constant 0 : index
    %8 = vector.load %arg3[%c0_3, %c0_4] : memref<32x32xf32, #tpu.memory_space<vmem>>, vector<32x32xf32>
    %cst_5 = arith.constant dense<0.000000e+00> : vector<16x32xf32>
    %9 = tpu.matmul %7, %8, %cst_5 {dimension_numbers = #tpu.dot_dimension_numbers<[1], [0], [0], [1], [0, 0, 1, 1], [], []>} : vector<16x32xf32>, vector<32x32xf32>, vector<16x32xf32> -> vector<16x32xf32>
    %c0_6 = arith.constant 0 : index
    %c0_7 = arith.constant 0 : index
    %10 = vector.load %arg5[%c0_6, %c0_7] : memref<1x32xf32, #tpu.memory_space<vmem>>, vector<1x32xf32>
    %11 = vector.broadcast %10 : vector<1x32xf32> to vector<16x32xf32>
    %12 = arith.addf %9, %11 : vector<16x32xf32>
    %c0_8 = arith.constant 0 : index
    %c0_9 = arith.constant 0 : index
    %13 = vector.load %arg4[%c0_8, %c0_9] : memref<32x32xf32, #tpu.memory_space<vmem>>, vector<32x32xf32>
    %cst_10 = arith.constant 0.000000e+00 : f32
    %14 = vector.broadcast %cst_10 : f32 to vector<2x32xf32>
    %cst_11 = arith.constant 0.000000e+00 : f32
    %15 = vector.broadcast %cst_11 : f32 to vector<2x32xf32>
    %16 = vector.extract_strided_slice %12 {offsets = [0, 0], sizes = [2, 32], strides = [1, 1]} : vector<16x32xf32> to vector<2x32xf32>
    %cst_12 = arith.constant dense<0.000000e+00> : vector<2x32xf32>
    %17 = tpu.matmul %14, %13, %cst_12 {dimension_numbers = #tpu.dot_dimension_numbers<[1], [0], [0], [1], [0, 0, 1, 1], [], []>} : vector<2x32xf32>, vector<32x32xf32>, vector<2x32xf32> -> vector<2x32xf32>
    %18 = arith.addf %16, %17 : vector<2x32xf32>
    %19 = math.tanh %18 : vector<2x32xf32>
    %20 = arith.addf %15, %19 : vector<2x32xf32>
    %21 = vector.extract_strided_slice %12 {offsets = [2, 0], sizes = [2, 32], strides = [1, 1]} : vector<16x32xf32> to vector<2x32xf32>
    %cst_13 = arith.constant dense<0.000000e+00> : vector<2x32xf32>
    %22 = tpu.matmul %19, %13, %cst_13 {dimension_numbers = #tpu.dot_dimension_numbers<[1], [0], [0], [1], [0, 0, 1, 1], [], []>} : vector<2x32xf32>, vector<32x32xf32>, vector<2x32xf32> -> vector<2x32xf32>
    %23 = arith.addf %21, %22 : vector<2x32xf32>
    %24 = math.tanh %23 : vector<2x32xf32>
    %25 = arith.addf %20, %24 : vector<2x32xf32>
    %26 = vector.extract_strided_slice %12 {offsets = [4, 0], sizes = [2, 32], strides = [1, 1]} : vector<16x32xf32> to vector<2x32xf32>
    %cst_14 = arith.constant dense<0.000000e+00> : vector<2x32xf32>
    %27 = tpu.matmul %24, %13, %cst_14 {dimension_numbers = #tpu.dot_dimension_numbers<[1], [0], [0], [1], [0, 0, 1, 1], [], []>} : vector<2x32xf32>, vector<32x32xf32>, vector<2x32xf32> -> vector<2x32xf32>
    %28 = arith.addf %26, %27 : vector<2x32xf32>
    %29 = math.tanh %28 : vector<2x32xf32>
    %30 = arith.addf %25, %29 : vector<2x32xf32>
    %31 = vector.extract_strided_slice %12 {offsets = [6, 0], sizes = [2, 32], strides = [1, 1]} : vector<16x32xf32> to vector<2x32xf32>
    %cst_15 = arith.constant dense<0.000000e+00> : vector<2x32xf32>
    %32 = tpu.matmul %29, %13, %cst_15 {dimension_numbers = #tpu.dot_dimension_numbers<[1], [0], [0], [1], [0, 0, 1, 1], [], []>} : vector<2x32xf32>, vector<32x32xf32>, vector<2x32xf32> -> vector<2x32xf32>
    %33 = arith.addf %31, %32 : vector<2x32xf32>
    %34 = math.tanh %33 : vector<2x32xf32>
    %35 = arith.addf %30, %34 : vector<2x32xf32>
    %36 = vector.extract_strided_slice %12 {offsets = [8, 0], sizes = [2, 32], strides = [1, 1]} : vector<16x32xf32> to vector<2x32xf32>
    %cst_16 = arith.constant dense<0.000000e+00> : vector<2x32xf32>
    %37 = tpu.matmul %34, %13, %cst_16 {dimension_numbers = #tpu.dot_dimension_numbers<[1], [0], [0], [1], [0, 0, 1, 1], [], []>} : vector<2x32xf32>, vector<32x32xf32>, vector<2x32xf32> -> vector<2x32xf32>
    %38 = arith.addf %36, %37 : vector<2x32xf32>
    %39 = math.tanh %38 : vector<2x32xf32>
    %40 = arith.addf %35, %39 : vector<2x32xf32>
    %41 = vector.extract_strided_slice %12 {offsets = [10, 0], sizes = [2, 32], strides = [1, 1]} : vector<16x32xf32> to vector<2x32xf32>
    %cst_17 = arith.constant dense<0.000000e+00> : vector<2x32xf32>
    %42 = tpu.matmul %39, %13, %cst_17 {dimension_numbers = #tpu.dot_dimension_numbers<[1], [0], [0], [1], [0, 0, 1, 1], [], []>} : vector<2x32xf32>, vector<32x32xf32>, vector<2x32xf32> -> vector<2x32xf32>
    %43 = arith.addf %41, %42 : vector<2x32xf32>
    %44 = math.tanh %43 : vector<2x32xf32>
    %45 = arith.addf %40, %44 : vector<2x32xf32>
    %46 = vector.extract_strided_slice %12 {offsets = [12, 0], sizes = [2, 32], strides = [1, 1]} : vector<16x32xf32> to vector<2x32xf32>
    %cst_18 = arith.constant dense<0.000000e+00> : vector<2x32xf32>
    %47 = tpu.matmul %44, %13, %cst_18 {dimension_numbers = #tpu.dot_dimension_numbers<[1], [0], [0], [1], [0, 0, 1, 1], [], []>} : vector<2x32xf32>, vector<32x32xf32>, vector<2x32xf32> -> vector<2x32xf32>
    %48 = arith.addf %46, %47 : vector<2x32xf32>
    %49 = math.tanh %48 : vector<2x32xf32>
    %50 = arith.addf %45, %49 : vector<2x32xf32>
    %51 = vector.extract_strided_slice %12 {offsets = [14, 0], sizes = [2, 32], strides = [1, 1]} : vector<16x32xf32> to vector<2x32xf32>
    %cst_19 = arith.constant dense<0.000000e+00> : vector<2x32xf32>
    %52 = tpu.matmul %49, %13, %cst_19 {dimension_numbers = #tpu.dot_dimension_numbers<[1], [0], [0], [1], [0, 0, 1, 1], [], []>} : vector<2x32xf32>, vector<32x32xf32>, vector<2x32xf32> -> vector<2x32xf32>
    %53 = arith.addf %51, %52 : vector<2x32xf32>
    %54 = math.tanh %53 : vector<2x32xf32>
    %55 = arith.addf %50, %54 : vector<2x32xf32>
    %cst_20 = arith.constant 1.250000e-01 : f32
    %56 = vector.broadcast %cst_20 : f32 to vector<2x32xf32>
    %57 = arith.mulf %55, %56 : vector<2x32xf32>
    %c0_21 = arith.constant 0 : index
    %c0_22 = arith.constant 0 : index
    %58 = vector.load %arg6[%c0_21, %c0_22] : memref<32x8xf32, #tpu.memory_space<vmem>>, vector<32x8xf32>
    %cst_23 = arith.constant dense<0.000000e+00> : vector<2x8xf32>
    %59 = tpu.matmul %57, %58, %cst_23 {dimension_numbers = #tpu.dot_dimension_numbers<[1], [0], [0], [1], [0, 0, 1, 1], [], []>} : vector<2x32xf32>, vector<32x8xf32>, vector<2x8xf32> -> vector<2x8xf32>
    %c0_24 = arith.constant 0 : index
    %c0_25 = arith.constant 0 : index
    %60 = vector.load %arg7[%c0_24, %c0_25] : memref<1x8xf32, #tpu.memory_space<vmem>>, vector<1x8xf32>
    %61 = vector.broadcast %60 : vector<1x8xf32> to vector<2x8xf32>
    %62 = arith.addf %59, %61 : vector<2x8xf32>
    %c0_26 = arith.constant 0 : index
    %c0_27 = arith.constant 0 : index
    %63 = vector.load %arg8[%c0_26, %c0_27] : memref<2x8xf32, #tpu.memory_space<vmem>>, vector<2x8xf32>
    tpu.vector_store %arg8[%c0_26, %c0_27], %62 {strides = array<i32>} : memref<2x8xf32, #tpu.memory_space<vmem>>, vector<2x8xf32>,
    return
  }
  func.func @transform_0(%arg0: i32) -> (i32, i32) {
    %c0_i32 = arith.constant 0 : i32
    %c0_i32_0 = arith.constant 0 : i32
    %c0_i32_1 = arith.constant 0 : i32
    return %c0_i32, %c0_i32_0 : i32, i32
  }
  func.func @transform_1(%arg0: i32) -> (i32, i32) {
    %c0_i32 = arith.constant 0 : i32
    %c0_i32_0 = arith.constant 0 : i32
    %c0_i32_1 = arith.constant 0 : i32
    return %c0_i32, %c0_i32_0 : i32, i32
  }
  func.func @transform_2(%arg0: i32) -> (i32, i32) {
    %c0_i32 = arith.constant 0 : i32
    %c0_i32_0 = arith.constant 0 : i32
    %c0_i32_1 = arith.constant 0 : i32
    return %c0_i32, %c0_i32_0 : i32, i32
  }
  func.func @transform_3(%arg0: i32) -> (i32, i32) {
    %c0_i32 = arith.constant 0 : i32
    %c0_i32_0 = arith.constant 0 : i32
    %c0_i32_1 = arith.constant 0 : i32
    return %c0_i32, %c0_i32_0 : i32, i32
  }
  func.func @transform_4(%arg0: i32) -> (i32, i32) {
    %c0_i32 = arith.constant 0 : i32
    %c0_i32_0 = arith.constant 0 : i32
    %c0_i32_1 = arith.constant 0 : i32
    return %c0_i32, %c0_i32_0 : i32, i32
  }
  func.func @transform_5(%arg0: i32) -> (i32, i32) {
    %c0_i32 = arith.constant 0 : i32
    %c0_i32_0 = arith.constant 0 : i32
    %c0_i32_1 = arith.constant 0 : i32
    return %c0_i32, %c0_i32_0 : i32, i32
  }
  func.func @transform_6(%arg0: i32) -> (i32, i32) {
    %c0_i32 = arith.constant 0 : i32
    %c0_i32_0 = arith.constant 0 : i32
    %c0_i32_1 = arith.constant 0 : i32
    return %c0_i32, %c0_i32_0 : i32, i32
  }
  func.func @transform_7(%arg0: i32) -> (i32, i32) {
    %c0_i32 = arith.constant 0 : i32
    %c0_i32_0 = arith.constant 0 : i32
    %c0_i32_1 = arith.constant 0 : i32
    return %c0_i32, %c0_i32_0 : i32, i32
  }
}

</mosaic_0001>

<llo_original>
// kernel: tpu_custom_call.1
$region0: #{tpu_custom_call.1}
  #allocation0 [shape = 'u32[]', space=smem, size = 0x4, offset = 0x4, fixed_abs, tag = 'smem constant byte address 0x4 - core index']
  #allocation1 [shape = 'u32[144,128]{1,0:T(1,128)}', space=vmem, size = 0x12000, scoped, tag = 'internal scratch']
  %s0 = inlined_call_operand.vmem [shape: s32[16,1], index: 0, kind: input, shape index: {}]
  %s1 = inlined_call_operand.vmem [shape: f32[30,32], index: 1, kind: input, shape index: {}]
  %s2 = inlined_call_operand.vmem [shape: f32[32,32], index: 2, kind: input, shape index: {}]
  %s3 = inlined_call_operand.hbm [shape: f32[32,32], index: 3, kind: input, shape index: {}]
  %s4 = inlined_call_operand.hbm [shape: f32[1,32], index: 4, kind: input, shape index: {}]
  %s5 = inlined_call_operand.vmem [shape: f32[32,8], index: 5, kind: input, shape index: {}]
  %s6 = inlined_call_operand.vmem [shape: f32[1,8], index: 6, kind: input, shape index: {}]
  %s7 = inlined_call_operand.hbm [shape: f32[2,8], index: 7, kind: output, shape index: {}]
  %s8 = sld [smem:[#allocation0]]
  $region46: #{tpu_custom_call.1} parent=0
    _
  %s10 = ssub.s32 1, %s8
  %s11 = scalar_select 0, %s10, %s8
  $region1: #{tpu_custom_call.1} parent=0
    #allocation2 [shape = 'u8[16384]{0}', space=vmem, size = 0x4000, scoped, tag = 'input window, operand 3, single buffered']
    #allocation3 [shape = 's32[1]{0}', space=sflag, size = 0x4, scoped, tag = 'scoped memory for tpu_custom_call.1']
    #allocation4 [shape = 's32[1]{0}', space=sflag, size = 0x4, scoped, tag = 'scoped memory for tpu_custom_call.1']
    #allocation5 [shape = 'u8[512]{0}', space=vmem, size = 0x400, scoped, tag = 'input window, operand 4, single buffered']
    #allocation6 [shape = 's32[1]{0}', space=sflag, size = 0x4, scoped, tag = 'scoped memory for tpu_custom_call.1']
    #allocation7 [shape = 'u8[1024]{0}', space=vmem, size = 0x400, scoped, tag = 'output window, operand 0, single buffered']
    %12 = vsyncpa [#allocation3], 0
    %13 = vsyncpa [#allocation6], 0
    %14 = vsyncpa [#allocation4], 0
    // Predicated region
    $region2: #{tpu_custom_call.1} parent=1 // pred_check
      _
    $region3: #{tpu_custom_call.1} parent=1 // pred_check_branch
      %16 = sbr.rel (0) target = $region5
    $region4: #{tpu_custom_call.1} parent=1 // pred_region
      _
    $region5: #{tpu_custom_call.1} parent=1 // pred_fallthru
      _
    // Predicated region
    $region6: #{tpu_custom_call.1} parent=1 // pred_check
      _
    $region7: #{tpu_custom_call.1} parent=1 // pred_check_branch
      %18 = sbr.rel (0) target = $region9
    $region8: #{tpu_custom_call.1} parent=1 // pred_region
      _
    $region9: #{tpu_custom_call.1} parent=1 // pred_fallthru
      _
    // Predicated region
    $region10: #{tpu_custom_call.1} parent=1 // pred_check
      _
    $region11: #{tpu_custom_call.1} parent=1 // pred_check_branch
      %20 = sbr.rel (0) target = $region13
    $region12: #{tpu_custom_call.1} parent=1 // pred_region
      _
    $region13: #{tpu_custom_call.1} parent=1 // pred_fallthru
      _
    // Predicated region
    $region14: #{tpu_custom_call.1} parent=1 // pred_check
      _
    $region15: #{tpu_custom_call.1} parent=1 // pred_check_branch
      %22 = sbr.rel (0) target = $region17
    $region16: #{tpu_custom_call.1} parent=1 // pred_region
      %s24 = ssub.s32 512, 512
      %25 = vsyncadd [#allocation3], %s24
      %s26 = sshll.u32 [#allocation2], 4
      %s27 = int_to_ptr.vmem [resolvable:$true] %s26
      %32 = dma.hbm_to_vmem [thread:$0]  %s3, 512, %s27, [#allocation3], 128, 128, 8
    $region17: #{tpu_custom_call.1} parent=1 // pred_fallthru
      _
    // Predicated region
    $region18: #{tpu_custom_call.1} parent=1 // pred_check
      _
    $region19: #{tpu_custom_call.1} parent=1 // pred_check_branch
      %34 = sbr.rel (0) target = $region21
    $region20: #{tpu_custom_call.1} parent=1 // pred_region
      %s36 = ssub.s32 16, 16
      %37 = vsyncadd [#allocation6], %s36
      %s39 = sshll.u32 [#allocation5], 4
      %s40 = int_to_ptr.vmem [resolvable:$true] %s39
      %42 = dma.hbm_to_vmem [thread:$0]  %s4, 16, %s40, [#allocation6]
    $region21: #{tpu_custom_call.1} parent=1 // pred_fallthru
      _
    // Predicated region
    $region22: #{tpu_custom_call.1} parent=1 // pred_check
      _
    $region23: #{tpu_custom_call.1} parent=1 // pred_check_branch
      %44 = sbr.rel (0) target = $region25
    $region24: #{tpu_custom_call.1} parent=1 // pred_region
      _
    $region25: #{tpu_custom_call.1} parent=1 // pred_fallthru
      _
    // Predicated region
    $region26: #{tpu_custom_call.1} parent=1 // pred_check
      _
    $region27: #{tpu_custom_call.1} parent=1 // pred_check_branch
      %46 = sbr.rel (0) target = $region29
    $region28: #{tpu_custom_call.1} parent=1 // pred_region
      _
    $region29: #{tpu_custom_call.1} parent=1 // pred_fallthru
      _
    // Predicated region
    $region30: #{tpu_custom_call.1} parent=1 // pred_check
      _
    $region31: #{tpu_custom_call.1} parent=1 // pred_check_branch
      %48 = sbr.rel (0) target = $region33
    $region32: #{tpu_custom_call.1} parent=1 // pred_region
      %49 = dma.done [#allocation3], 512
    $region33: #{tpu_custom_call.1} parent=1 // pred_fallthru
      _
    // Predicated region
    $region34: #{tpu_custom_call.1} parent=1 // pred_check
      _
    $region35: #{tpu_custom_call.1} parent=1 // pred_check_branch
      %51 = sbr.rel (0) target = $region37
    $region36: #{tpu_custom_call.1} parent=1 // pred_region
      %52 = dma.done [#allocation6], 16
    $region37: #{tpu_custom_call.1} parent=1 // pred_fallthru
      _
    %v53 = vld [vmem:[%s0] sm:$0xff]
    %v54 = vld [vmem:[%s0 + $0x8] sm:$0xff]
    %v55 = vlaneseq
    %v56 = vand.u32 %v55, 127
    %57 = vset.pattern.permute.xlu0 0
    %58 = vperm.xlu0 %57, %v53
    %v59 = vpop.permute.xlu0 %58
    %60 = vset.pattern.permute.xlu0 0
    %61 = vperm.xlu0 %60, %v54
    %v62 = vpop.permute.xlu0 %61
    %vm63 = vcmp.eq.s32.totalorder %v56, %v59
    %vm64 = vcmp.eq.s32.totalorder %v56, %v62
    %v65 = vsel %vm63, 1, 0
    %v66 = vsel %vm64, 1, 0
    %v67 = vcvt.s32.f32 %v65
    %v68 = vcvt.s32.f32 %v66
    %v69 = vld [vmem:[%s1] sm:$0xff]
    %v70 = vld [vmem:[%s1 + $0x8] sm:$0xff]
    %v71 = vld [vmem:[%s1 + $0x10] sm:$0xff]
    %v72 = vld [vmem:[%s1 + $0x18] sm:$0x3f]
    %vm73 = vcmask 244736
    %v75 = vsel %vm73, %v67, 0
    %v78 = vsel %vm73, %v68, 0
    %vm80 = vcmask 1045504
    %v82 = vsel %vm80, %v72, 0
    %84 = vmatprep.subr.mxu0 0.0
    %85 = vmatpush1.msra.mxu0 %v69
    %86 = vmatprep.subr.mxu0 0.0
    %87 = vmatpush1.msra.mxu0 %v70
    %88 = vmatprep.subr.mxu0 0.0
    %89 = vmatpush1.msra.mxu0 %v71
    %90 = vmatprep.subr.mxu0 0.0
    %91 = vmatpush1.msra.mxu0 %v82
    %92 = vmatprep.subr.mxu0 0.0
    %93 = vmatpush1.msra.mxu0 0.0
    %94 = vmatprep.subr.mxu0 0.0
    %95 = vmatpush1.msra.mxu0 0.0
    %96 = vmatprep.subr.mxu0 0.0
    %97 = vmatpush1.msra.mxu0 0.0
    %98 = vmatprep.subr.mxu0 0.0
    %99 = vmatpush1.msra.mxu0 0.0
    %100 = vmatprep.subr.mxu0 0.0
    %101 = vmatpush1.msra.mxu0 0.0
    %102 = vmatprep.subr.mxu0 0.0
    %103 = vmatpush1.msra.mxu0 0.0
    %104 = vmatprep.subr.mxu0 0.0
    %105 = vmatpush1.msra.mxu0 0.0
    %106 = vmatprep.subr.mxu0 0.0
    %107 = vmatpush1.msra.mxu0 0.0
    %108 = vmatprep.subr.mxu0 0.0
    %109 = vmatpush1.msra.mxu0 0.0
    %110 = vmatprep.subr.mxu0 0.0
    %111 = vmatpush1.msra.mxu0 0.0
    %112 = vmatprep.subr.mxu0 0.0
    %113 = vmatpush1.msra.mxu0 0.0
    %114 = vmatprep.subr.mxu0 0.0
    %115 = vmatpush1.msra.mxu0 0.0
    %116 = vmatprep.subr.mxu0 0.0
    %117 = vmatpush1.msra.mxu0 0.0
    %118 = vmatprep.subr.mxu0 0.0
    %119 = vmatpush1.msra.mxu0 0.0
    %120 = vmatprep.subr.mxu0 0.0
    %121 = vmatpush1.msra.mxu0 0.0
    %122 = vmatprep.subr.mxu0 0.0
    %123 = vmatpush1.msra.mxu0 0.0
    %124 = vmatprep.subr.mxu0 0.0
    %125 = vmatpush1.msra.mxu0 0.0
    %126 = vmatprep.subr.mxu0 0.0
    %127 = vmatpush1.msra.mxu0 0.0
    %128 = vmatprep.subr.mxu0 0.0
    %129 = vmatpush1.msra.mxu0 0.0
    %130 = vmatprep.subr.mxu0 0.0
    %131 = vmatpush1.msra.mxu0 0.0
    %132 = vmatprep.subr.mxu0 0.0
    %133 = vmatpush1.msra.mxu0 0.0
    %134 = vmatprep.subr.mxu0 0.0
    %135 = vmatpush1.msra.mxu0 0.0
    %136 = vmatprep.subr.mxu0 0.0
    %137 = vmatpush1.msra.mxu0 0.0
    %138 = vmatprep.subr.mxu0 0.0
    %139 = vmatpush1.msra.mxu0 0.0
    %140 = vmatprep.subr.mxu0 0.0
    %141 = vmatpush1.msra.mxu0 0.0
    %142 = vmatprep.subr.mxu0 0.0
    %143 = vmatpush1.msra.mxu0 0.0
    %144 = vmatprep.subr.mxu0 0.0
    %145 = vmatpush1.msra.mxu0 0.0
    %146 = vmatprep.subr.mxu0 0.0
    %147 = vmatpush1.msra.mxu0 0.0
    %148 = vmatprep.mubr.f32.mxu0 0.0
    %149 = vmatmul.mubr.f32.gmra.mrb[0].mxu0 %v75
    %v150 = vpop.f32.mrb[0].mxu0
    %v151 = vadd.f32 0.0, %v150
    %v152 = vpop.f32.mrb[0].mxu0
    %153 = vmatprep.mubr.f32.mxu0 0.0
    %154 = vmatmul.mubr.f32.gmra.mrb[0].mxu0 %v78
    %v155 = vpop.f32.mrb[0].mxu0
    %v156 = vadd.f32 0.0, %v155
    %v157 = vpop.f32.mrb[0].mxu0
    %158 = vdwg.mxu0
    %v159 = vld [vmem:[%s2] sm:$0xff]
    %v160 = vld [vmem:[%s2 + $0x8] sm:$0xff]
    %v161 = vld [vmem:[%s2 + $0x10] sm:$0xff]
    %v162 = vld [vmem:[%s2 + $0x18] sm:$0xff]
    %v163 = vld [vmem:[#allocation5] sm:$0x1]
    %v165 = vlaneseq
    %v166 = vshrl.u32 %v165, 7
    %v167 = vsub.s32 0, %v166
    %v168 = vrot.slane %v163, %v167
    %vm170 = vcmask 261120
    %v172 = vsel %vm170, %v151, 0
    %v175 = vsel %vm170, %v156, 0
    %177 = vmatprep.subr.mxu0 0.0
    %178 = vmatpush1.msra.mxu0 %v159
    %179 = vmatprep.subr.mxu0 0.0
    %180 = vmatpush1.msra.mxu0 %v160
    %181 = vmatprep.subr.mxu0 0.0
    %182 = vmatpush1.msra.mxu0 %v161
    %183 = vmatprep.subr.mxu0 0.0
    %184 = vmatpush1.msra.mxu0 %v162
    %185 = vmatprep.subr.mxu0 0.0
    %186 = vmatpush1.msra.mxu0 0.0
    %187 = vmatprep.subr.mxu0 0.0
    %188 = vmatpush1.msra.mxu0 0.0
    %189 = vmatprep.subr.mxu0 0.0
    %190 = vmatpush1.msra.mxu0 0.0
    %191 = vmatprep.subr.mxu0 0.0
    %192 = vmatpush1.msra.mxu0 0.0
    %193 = vmatprep.subr.mxu0 0.0
    %194 = vmatpush1.msra.mxu0 0.0
    %195 = vmatprep.subr.mxu0 0.0
    %196 = vmatpush1.msra.mxu0 0.0
    %197 = vmatprep.subr.mxu0 0.0
    %198 = vmatpush1.msra.mxu0 0.0
    %199 = vmatprep.subr.mxu0 0.0
    %200 = vmatpush1.msra.mxu0 0.0
    %201 = vmatprep.subr.mxu0 0.0
    %202 = vmatpush1.msra.mxu0 0.0
    %203 = vmatprep.subr.mxu0 0.0
    %204 = vmatpush1.msra.mxu0 0.0
    %205 = vmatprep.subr.mxu0 0.0
    %206 = vmatpush1.msra.mxu0 0.0
    %207 = vmatprep.subr.mxu0 0.0
    %208 = vmatpush1.msra.mxu0 0.0
    %209 = vmatprep.subr.mxu0 0.0
    %210 = vmatpush1.msra.mxu0 0.0
    %211 = vmatprep.subr.mxu0 0.0
    %212 = vmatpush1.msra.mxu0 0.0
    %213 = vmatprep.subr.mxu0 0.0
    %214 = vmatpush1.msra.mxu0 0.0
    %215 = vmatprep.subr.mxu0 0.0
    %216 = vmatpush1.msra.mxu0 0.0
    %217 = vmatprep.subr.mxu0 0.0
    %218 = vmatpush1.msra.mxu0 0.0
    %219 = vmatprep.subr.mxu0 0.0
    %220 = vmatpush1.msra.mxu0 0.0
    %221 = vmatprep.subr.mxu0 0.0
    %222 = vmatpush1.msra.mxu0 0.0
    %223 = vmatprep.subr.mxu0 0.0
    %224 = vmatpush1.msra.mxu0 0.0
    %225 = vmatprep.subr.mxu0 0.0
    %226 = vmatpush1.msra.mxu0 0.0
    %227 = vmatprep.subr.mxu0 0.0
    %228 = vmatpush1.msra.mxu0 0.0
    %229 = vmatprep.subr.mxu0 0.0
    %230 = vmatpush1.msra.mxu0 0.0
    %231 = vmatprep.subr.mxu0 0.0
    %232 = vmatpush1.msra.mxu0 0.0
    %233 = vmatprep.subr.mxu0 0.0
    %234 = vmatpush1.msra.mxu0 0.0
    %235 = vmatprep.subr.mxu0 0.0
    %236 = vmatpush1.msra.mxu0 0.0
    %237 = vmatprep.subr.mxu0 0.0
    %238 = vmatpush1.msra.mxu0 0.0
    %239 = vmatprep.subr.mxu0 0.0
    %240 = vmatpush1.msra.mxu0 0.0
    %241 = vmatprep.mubr.f32.mxu0 0.0
    %242 = vmatmul.mubr.f32.gmra.mrb[0].mxu0 %v172
    %v243 = vpop.f32.mrb[0].mxu0
    %v244 = vadd.f32 %v168, %v243
    %v245 = vpop.f32.mrb[0].mxu0
    %246 = vmatprep.mubr.f32.mxu0 0.0
    %247 = vmatmul.mubr.f32.gmra.mrb[0].mxu0 %v175
    %v248 = vpop.f32.mrb[0].mxu0
    %v249 = vadd.f32 %v168, %v248
    %v250 = vpop.f32.mrb[0].mxu0
    %251 = vdwg.mxu0
    %v252 = vld [vmem:[#allocation2] sm:$0xff]
    %v253 = vld [vmem:[#allocation2 + $0x8] sm:$0xff]
    %v254 = vld [vmem:[#allocation2 + $0x10] sm:$0xff]
    %v255 = vld [vmem:[#allocation2 + $0x18] sm:$0xff]
    %v257 = vsel %vm170, 0.0, 0
    %259 = vmatprep.subr.mxu0 0.0
    %260 = vmatpush1.msra.mxu0 %v252
    %261 = vmatprep.subr.mxu0 0.0
    %262 = vmatpush1.msra.mxu0 %v253
    %263 = vmatprep.subr.mxu0 0.0
    %264 = vmatpush1.msra.mxu0 %v254
    %265 = vmatprep.subr.mxu0 0.0
    %266 = vmatpush1.msra.mxu0 %v255
    %267 = vmatprep.subr.mxu0 0.0
    %268 = vmatpush1.msra.mxu0 0.0
    %269 = vmatprep.subr.mxu0 0.0
    %270 = vmatpush1.msra.mxu0 0.0
    %271 = vmatprep.subr.mxu0 0.0
    %272 = vmatpush1.msra.mxu0 0.0
    %273 = vmatprep.subr.mxu0 0.0
    %274 = vmatpush1.msra.mxu0 0.0
    %275 = vmatprep.subr.mxu0 0.0
    %276 = vmatpush1.msra.mxu0 0.0
    %277 = vmatprep.subr.mxu0 0.0
    %278 = vmatpush1.msra.mxu0 0.0
    %279 = vmatprep.subr.mxu0 0.0
    %280 = vmatpush1.msra.mxu0 0.0
    %281 = vmatprep.subr.mxu0 0.0
    %282 = vmatpush1.msra.mxu0 0.0
    %283 = vmatprep.subr.mxu0 0.0
    %284 = vmatpush1.msra.mxu0 0.0
    %285 = vmatprep.subr.mxu0 0.0
    %286 = vmatpush1.msra.mxu0 0.0
    %287 = vmatprep.subr.mxu0 0.0
    %288 = vmatpush1.msra.mxu0 0.0
    %289 = vmatprep.subr.mxu0 0.0
    %290 = vmatpush1.msra.mxu0 0.0
    %291 = vmatprep.subr.mxu0 0.0
    %292 = vmatpush1.msra.mxu0 0.0
    %293 = vmatprep.subr.mxu0 0.0
    %294 = vmatpush1.msra.mxu0 0.0
    %295 = vmatprep.subr.mxu0 0.0
    %296 = vmatpush1.msra.mxu0 0.0
    %297 = vmatprep.subr.mxu0 0.0
    %298 = vmatpush1.msra.mxu0 0.0
    %299 = vmatprep.subr.mxu0 0.0
    %300 = vmatpush1.msra.mxu0 0.0
    %301 = vmatprep.subr.mxu0 0.0
    %302 = vmatpush1.msra.mxu0 0.0
    %303 = vmatprep.subr.mxu0 0.0
    %304 = vmatpush1.msra.mxu0 0.0
    %305 = vmatprep.subr.mxu0 0.0
    %306 = vmatpush1.msra.mxu0 0.0
    %307 = vmatprep.subr.mxu0 0.0
    %308 = vmatpush1.msra.mxu0 0.0
    %309 = vmatprep.subr.mxu0 0.0
    %310 = vmatpush1.msra.mxu0 0.0
    %311 = vmatprep.subr.mxu0 0.0
    %312 = vmatpush1.msra.mxu0 0.0
    %313 = vmatprep.subr.mxu0 0.0
    %314 = vmatpush1.msra.mxu0 0.0
    %315 = vmatprep.subr.mxu0 0.0
    %316 = vmatpush1.msra.mxu0 0.0
    %317 = vmatprep.subr.mxu0 0.0
    %318 = vmatpush1.msra.mxu0 0.0
    %319 = vmatprep.subr.mxu0 0.0
    %320 = vmatpush1.msra.mxu0 0.0
    %321 = vmatprep.subr.mxu0 0.0
    %322 = vmatpush1.msra.mxu0 0.0
    %323 = vmatprep.mubr.f32.mxu0 0.0
    %324 = vmatmul.mubr.f32.gmra.mrb[0].mxu0 %v257
    %v325 = vpop.f32.mrb[0].mxu0
    %v326 = vadd.f32 0.0, %v325
    %v327 = vpop.f32.mrb[0].mxu0
    %328 = vdwg.mxu0
    %v329 = vadd.f32 %v244, %v326
    %v330 = vtanh.pop %v329
    %v331 = vadd.f32 %v330, 0.0
    %v333 = vsel %vm170, %v330, 0
    %335 = vmatprep.subr.mxu0 0.0
    %336 = vmatpush1.msra.mxu0 %v252
    %337 = vmatprep.subr.mxu0 0.0
    %338 = vmatpush1.msra.mxu0 %v253
    %339 = vmatprep.subr.mxu0 0.0
    %340 = vmatpush1.msra.mxu0 %v254
    %341 = vmatprep.subr.mxu0 0.0
    %342 = vmatpush1.msra.mxu0 %v255
    %343 = vmatprep.subr.mxu0 0.0
    %344 = vmatpush1.msra.mxu0 0.0
    %345 = vmatprep.subr.mxu0 0.0
    %346 = vmatpush1.msra.mxu0 0.0
    %347 = vmatprep.subr.mxu0 0.0
    %348 = vmatpush1.msra.mxu0 0.0
    %349 = vmatprep.subr.mxu0 0.0
    %350 = vmatpush1.msra.mxu0 0.0
    %351 = vmatprep.subr.mxu0 0.0
    %352 = vmatpush1.msra.mxu0 0.0
    %353 = vmatprep.subr.mxu0 0.0
    %354 = vmatpush1.msra.mxu0 0.0
    %355 = vmatprep.subr.mxu0 0.0
    %356 = vmatpush1.msra.mxu0 0.0
    %357 = vmatprep.subr.mxu0 0.0
    %358 = vmatpush1.msra.mxu0 0.0
    %359 = vmatprep.subr.mxu0 0.0
    %360 = vmatpush1.msra.mxu0 0.0
    %361 = vmatprep.subr.mxu0 0.0
    %362 = vmatpush1.msra.mxu0 0.0
    %363 = vmatprep.subr.mxu0 0.0
    %364 = vmatpush1.msra.mxu0 0.0
    %365 = vmatprep.subr.mxu0 0.0
    %366 = vmatpush1.msra.mxu0 0.0
    %367 = vmatprep.subr.mxu0 0.0
    %368 = vmatpush1.msra.mxu0 0.0
    %369 = vmatprep.subr.mxu0 0.0
    %370 = vmatpush1.msra.mxu0 0.0
    %371 = vmatprep.subr.mxu0 0.0
    %372 = vmatpush1.msra.mxu0 0.0
    %373 = vmatprep.subr.mxu0 0.0
    %374 = vmatpush1.msra.mxu0 0.0
    %375 = vmatprep.subr.mxu0 0.0
    %376 = vmatpush1.msra.mxu0 0.0
    %377 = vmatprep.subr.mxu0 0.0
    %378 = vmatpush1.msra.mxu0 0.0
    %379 = vmatprep.subr.mxu0 0.0
    %380 = vmatpush1.msra.mxu0 0.0
    %381 = vmatprep.subr.mxu0 0.0
    %382 = vmatpush1.msra.mxu0 0.0
    %383 = vmatprep.subr.mxu0 0.0
    %384 = vmatpush1.msra.mxu0 0.0
    %385 = vmatprep.subr.mxu0 0.0
    %386 = vmatpush1.msra.mxu0 0.0
    %387 = vmatprep.subr.mxu0 0.0
    %388 = vmatpush1.msra.mxu0 0.0
    %389 = vmatprep.subr.mxu0 0.0
    %390 = vmatpush1.msra.mxu0 0.0
    %391 = vmatprep.subr.mxu0 0.0
    %392 = vmatpush1.msra.mxu0 0.0
    %393 = vmatprep.subr.mxu0 0.0
    %394 = vmatpush1.msra.mxu0 0.0
    %395 = vmatprep.subr.mxu0 0.0
    %396 = vmatpush1.msra.mxu0 0.0
    %397 = vmatprep.subr.mxu0 0.0
    %398 = vmatpush1.msra.mxu0 0.0
    %399 = vmatprep.mubr.f32.mxu0 0.0
    %400 = vmatmul.mubr.f32.gmra.mrb[0].mxu0 %v333
    %v401 = vpop.f32.mrb[0].mxu0
    %v402 = vadd.f32 0.0, %v401
    %v403 = vpop.f32.mrb[0].mxu0
    %404 = vdwg.mxu0
    %v406 = vrot.slane %v402, 6
    %v408 = vadd.f32 %v244, %v406
    %v409 = vtanh.pop %v408
    %v411 = vrot.slane %v409, 2
    %v413 = vadd.f32 %v331, %v411
    %v414 = vsel %vm170, %v411, 0
    %416 = vmatprep.subr.mxu0 0.0
    %417 = vmatpush1.msra.mxu0 %v252
    %418 = vmatprep.subr.mxu0 0.0
    %419 = vmatpush1.msra.mxu0 %v253
    %420 = vmatprep.subr.mxu0 0.0
    %421 = vmatpush1.msra.mxu0 %v254
    %422 = vmatprep.subr.mxu0 0.0
    %423 = vmatpush1.msra.mxu0 %v255
    %424 = vmatprep.subr.mxu0 0.0
    %425 = vmatpush1.msra.mxu0 0.0
    %426 = vmatprep.subr.mxu0 0.0
    %427 = vmatpush1.msra.mxu0 0.0
    %428 = vmatprep.subr.mxu0 0.0
    %429 = vmatpush1.msra.mxu0 0.0
    %430 = vmatprep.subr.mxu0 0.0
    %431 = vmatpush1.msra.mxu0 0.0
    %432 = vmatprep.subr.mxu0 0.0
    %433 = vmatpush1.msra.mxu0 0.0
    %434 = vmatprep.subr.mxu0 0.0
    %435 = vmatpush1.msra.mxu0 0.0
    %436 = vmatprep.subr.mxu0 0.0
    %437 = vmatpush1.msra.mxu0 0.0
    %438 = vmatprep.subr.mxu0 0.0
    %439 = vmatpush1.msra.mxu0 0.0
    %440 = vmatprep.subr.mxu0 0.0
    %441 = vmatpush1.msra.mxu0 0.0
    %442 = vmatprep.subr.mxu0 0.0
    %443 = vmatpush1.msra.mxu0 0.0
    %444 = vmatprep.subr.mxu0 0.0
    %445 = vmatpush1.msra.mxu0 0.0
    %446 = vmatprep.subr.mxu0 0.0
    %447 = vmatpush1.msra.mxu0 0.0
    %448 = vmatprep.subr.mxu0 0.0
    %449 = vmatpush1.msra.mxu0 0.0
    %450 = vmatprep.subr.mxu0 0.0
    %451 = vmatpush1.msra.mxu0 0.0
    %452 = vmatprep.subr.mxu0 0.0
    %453 = vmatpush1.msra.mxu0 0.0
    %454 = vmatprep.subr.mxu0 0.0
    %455 = vmatpush1.msra.mxu0 0.0
    %456 = vmatprep.subr.mxu0 0.0
    %457 = vmatpush1.msra.mxu0 0.0
    %458 = vmatprep.subr.mxu0 0.0
    %459 = vmatpush1.msra.mxu0 0.0
    %460 = vmatprep.subr.mxu0 0.0
    %461 = vmatpush1.msra.mxu0 0.0
    %462 = vmatprep.subr.mxu0 0.0
    %463 = vmatpush1.msra.mxu0 0.0
    %464 = vmatprep.subr.mxu0 0.0
    %465 = vmatpush1.msra.mxu0 0.0
    %466 = vmatprep.subr.mxu0 0.0
    %467 = vmatpush1.msra.mxu0 0.0
    %468 = vmatprep.subr.mxu0 0.0
    %469 = vmatpush1.msra.mxu0 0.0
    %470 = vmatprep.subr.mxu0 0.0
    %471 = vmatpush1.msra.mxu0 0.0
    %472 = vmatprep.subr.mxu0 0.0
    %473 = vmatpush1.msra.mxu0 0.0
    %474 = vmatprep.subr.mxu0 0.0
    %475 = vmatpush1.msra.mxu0 0.0
    %476 = vmatprep.subr.mxu0 0.0
    %477 = vmatpush1.msra.mxu0 0.0
    %478 = vmatprep.subr.mxu0 0.0
    %479 = vmatpush1.msra.mxu0 0.0
    %480 = vmatprep.mubr.f32.mxu0 0.0
    %481 = vmatmul.mubr.f32.gmra.mrb[0].mxu0 %v414
    %v482 = vpop.f32.mrb[0].mxu0
    %v483 = vadd.f32 0.0, %v482
    %v484 = vpop.f32.mrb[0].mxu0
    %485 = vdwg.mxu0
    %v487 = vrot.slane %v483, 4
    %v489 = vadd.f32 %v244, %v487
    %v490 = vtanh.pop %v489
    %v492 = vrot.slane %v490, 4
    %v494 = vadd.f32 %v413, %v492
    %v495 = vsel %vm170, %v492, 0
    %497 = vmatprep.subr.mxu0 0.0
    %498 = vmatpush1.msra.mxu0 %v252
    %499 = vmatprep.subr.mxu0 0.0
    %500 = vmatpush1.msra.mxu0 %v253
    %501 = vmatprep.subr.mxu0 0.0
    %502 = vmatpush1.msra.mxu0 %v254
    %503 = vmatprep.subr.mxu0 0.0
    %504 = vmatpush1.msra.mxu0 %v255
    %505 = vmatprep.subr.mxu0 0.0
    %506 = vmatpush1.msra.mxu0 0.0
    %507 = vmatprep.subr.mxu0 0.0
    %508 = vmatpush1.msra.mxu0 0.0
    %509 = vmatprep.subr.mxu0 0.0
    %510 = vmatpush1.msra.mxu0 0.0
    %511 = vmatprep.subr.mxu0 0.0
    %512 = vmatpush1.msra.mxu0 0.0
    %513 = vmatprep.subr.mxu0 0.0
    %514 = vmatpush1.msra.mxu0 0.0
    %515 = vmatprep.subr.mxu0 0.0
    %516 = vmatpush1.msra.mxu0 0.0
    %517 = vmatprep.subr.mxu0 0.0
    %518 = vmatpush1.msra.mxu0 0.0
    %519 = vmatprep.subr.mxu0 0.0
    %520 = vmatpush1.msra.mxu0 0.0
    %521 = vmatprep.subr.mxu0 0.0
    %522 = vmatpush1.msra.mxu0 0.0
    %523 = vmatprep.subr.mxu0 0.0
    %524 = vmatpush1.msra.mxu0 0.0
    %525 = vmatprep.subr.mxu0 0.0
    %526 = vmatpush1.msra.mxu0 0.0
    %527 = vmatprep.subr.mxu0 0.0
    %528 = vmatpush1.msra.mxu0 0.0
    %529 = vmatprep.subr.mxu0 0.0
    %530 = vmatpush1.msra.mxu0 0.0
    %531 = vmatprep.subr.mxu0 0.0
    %532 = vmatpush1.msra.mxu0 0.0
    %533 = vmatprep.subr.mxu0 0.0
    %534 = vmatpush1.msra.mxu0 0.0
    %535 = vmatprep.subr.mxu0 0.0
    %536 = vmatpush1.msra.mxu0 0.0
    %537 = vmatprep.subr.mxu0 0.0
    %538 = vmatpush1.msra.mxu0 0.0
    %539 = vmatprep.subr.mxu0 0.0
    %540 = vmatpush1.msra.mxu0 0.0
    %541 = vmatprep.subr.mxu0 0.0
    %542 = vmatpush1.msra.mxu0 0.0
    %543 = vmatprep.subr.mxu0 0.0
    %544 = vmatpush1.msra.mxu0 0.0
    %545 = vmatprep.subr.mxu0 0.0
    %546 = vmatpush1.msra.mxu0 0.0
    %547 = vmatprep.subr.mxu0 0.0
    %548 = vmatpush1.msra.mxu0 0.0
    %549 = vmatprep.subr.mxu0 0.0
    %550 = vmatpush1.msra.mxu0 0.0
    %551 = vmatprep.subr.mxu0 0.0
    %552 = vmatpush1.msra.mxu0 0.0
    %553 = vmatprep.subr.mxu0 0.0
    %554 = vmatpush1.msra.mxu0 0.0
    %555 = vmatprep.subr.mxu0 0.0
    %556 = vmatpush1.msra.mxu0 0.0
    %557 = vmatprep.subr.mxu0 0.0
    %558 = vmatpush1.msra.mxu0 0.0
    %559 = vmatprep.subr.mxu0 0.0
    %560 = vmatpush1.msra.mxu0 0.0
    %561 = vmatprep.mubr.f32.mxu0 0.0
    %562 = vmatmul.mubr.f32.gmra.mrb[0].mxu0 %v495
    %v563 = vpop.f32.mrb[0].mxu0
    %v564 = vadd.f32 0.0, %v563
    %v565 = vpop.f32.mrb[0].mxu0
    %566 = vdwg.mxu0
    %v568 = vrot.slane %v564, 2
    %v570 = vadd.f32 %v244, %v568
    %v571 = vtanh.pop %v570
    %v573 = vrot.slane %v571, 6
    %v575 = vadd.f32 %v494, %v573
    %v576 = vsel %vm170, %v573, 0
    %578 = vmatprep.subr.mxu0 0.0
    %579 = vmatpush1.msra.mxu0 %v252
    %580 = vmatprep.subr.mxu0 0.0
    %581 = vmatpush1.msra.mxu0 %v253
    %582 = vmatprep.subr.mxu0 0.0
    %583 = vmatpush1.msra.mxu0 %v254
    %584 = vmatprep.subr.mxu0 0.0
    %585 = vmatpush1.msra.mxu0 %v255
    %586 = vmatprep.subr.mxu0 0.0
    %587 = vmatpush1.msra.mxu0 0.0
    %588 = vmatprep.subr.mxu0 0.0
    %589 = vmatpush1.msra.mxu0 0.0
    %590 = vmatprep.subr.mxu0 0.0
    %591 = vmatpush1.msra.mxu0 0.0
    %592 = vmatprep.subr.mxu0 0.0
    %593 = vmatpush1.msra.mxu0 0.0
    %594 = vmatprep.subr.mxu0 0.0
    %595 = vmatpush1.msra.mxu0 0.0
    %596 = vmatprep.subr.mxu0 0.0
    %597 = vmatpush1.msra.mxu0 0.0
    %598 = vmatprep.subr.mxu0 0.0
    %599 = vmatpush1.msra.mxu0 0.0
    %600 = vmatprep.subr.mxu0 0.0
    %601 = vmatpush1.msra.mxu0 0.0
    %602 = vmatprep.subr.mxu0 0.0
    %603 = vmatpush1.msra.mxu0 0.0
    %604 = vmatprep.subr.mxu0 0.0
    %605 = vmatpush1.msra.mxu0 0.0
    %606 = vmatprep.subr.mxu0 0.0
    %607 = vmatpush1.msra.mxu0 0.0
    %608 = vmatprep.subr.mxu0 0.0
    %609 = vmatpush1.msra.mxu0 0.0
    %610 = vmatprep.subr.mxu0 0.0
    %611 = vmatpush1.msra.mxu0 0.0
    %612 = vmatprep.subr.mxu0 0.0
    %613 = vmatpush1.msra.mxu0 0.0
    %614 = vmatprep.subr.mxu0 0.0
    %615 = vmatpush1.msra.mxu0 0.0
    %616 = vmatprep.subr.mxu0 0.0
    %617 = vmatpush1.msra.mxu0 0.0
    %618 = vmatprep.subr.mxu0 0.0
    %619 = vmatpush1.msra.mxu0 0.0
    %620 = vmatprep.subr.mxu0 0.0
    %621 = vmatpush1.msra.mxu0 0.0
    %622 = vmatprep.subr.mxu0 0.0
    %623 = vmatpush1.msra.mxu0 0.0
    %624 = vmatprep.subr.mxu0 0.0
    %625 = vmatpush1.msra.mxu0 0.0
    %626 = vmatprep.subr.mxu0 0.0
    %627 = vmatpush1.msra.mxu0 0.0
    %628 = vmatprep.subr.mxu0 0.0
    %629 = vmatpush1.msra.mxu0 0.0
    %630 = vmatprep.subr.mxu0 0.0
    %631 = vmatpush1.msra.mxu0 0.0
    %632 = vmatprep.subr.mxu0 0.0
    %633 = vmatpush1.msra.mxu0 0.0
    %634 = vmatprep.subr.mxu0 0.0
    %635 = vmatpush1.msra.mxu0 0.0
    %636 = vmatprep.subr.mxu0 0.0
    %637 = vmatpush1.msra.mxu0 0.0
    %638 = vmatprep.subr.mxu0 0.0
    %639 = vmatpush1.msra.mxu0 0.0
    %640 = vmatprep.subr.mxu0 0.0
    %641 = vmatpush1.msra.mxu0 0.0
    %642 = vmatprep.mubr.f32.mxu0 0.0
    %643 = vmatmul.mubr.f32.gmra.mrb[0].mxu0 %v576
    %v644 = vpop.f32.mrb[0].mxu0
    %v645 = vadd.f32 0.0, %v644
    %v646 = vpop.f32.mrb[0].mxu0
    %647 = vdwg.mxu0
    %v648 = vadd.f32 %v249, %v645
    %v649 = vtanh.pop %v648
    %v650 = vadd.f32 %v575, %v649
    %v652 = vsel %vm170, %v649, 0
    %654 = vmatprep.subr.mxu0 0.0
    %655 = vmatpush1.msra.mxu0 %v252
    %656 = vmatprep.subr.mxu0 0.0
    %657 = vmatpush1.msra.mxu0 %v253
    %658 = vmatprep.subr.mxu0 0.0
    %659 = vmatpush1.msra.mxu0 %v254
    %660 = vmatprep.subr.mxu0 0.0
    %661 = vmatpush1.msra.mxu0 %v255
    %662 = vmatprep.subr.mxu0 0.0
    %663 = vmatpush1.msra.mxu0 0.0
    %664 = vmatprep.subr.mxu0 0.0
    %665 = vmatpush1.msra.mxu0 0.0
    %666 = vmatprep.subr.mxu0 0.0
    %667 = vmatpush1.msra.mxu0 0.0
    %668 = vmatprep.subr.mxu0 0.0
    %669 = vmatpush1.msra.mxu0 0.0
    %670 = vmatprep.subr.mxu0 0.0
    %671 = vmatpush1.msra.mxu0 0.0
    %672 = vmatprep.subr.mxu0 0.0
    %673 = vmatpush1.msra.mxu0 0.0
    %674 = vmatprep.subr.mxu0 0.0
    %675 = vmatpush1.msra.mxu0 0.0
    %676 = vmatprep.subr.mxu0 0.0
    %677 = vmatpush1.msra.mxu0 0.0
    %678 = vmatprep.subr.mxu0 0.0
    %679 = vmatpush1.msra.mxu0 0.0
    %680 = vmatprep.subr.mxu0 0.0
    %681 = vmatpush1.msra.mxu0 0.0
    %682 = vmatprep.subr.mxu0 0.0
    %683 = vmatpush1.msra.mxu0 0.0
    %684 = vmatprep.subr.mxu0 0.0
    %685 = vmatpush1.msra.mxu0 0.0
    %686 = vmatprep.subr.mxu0 0.0
    %687 = vmatpush1.msra.mxu0 0.0
    %688 = vmatprep.subr.mxu0 0.0
    %689 = vmatpush1.msra.mxu0 0.0
    %690 = vmatprep.subr.mxu0 0.0
    %691 = vmatpush1.msra.mxu0 0.0
    %692 = vmatprep.subr.mxu0 0.0
    %693 = vmatpush1.msra.mxu0 0.0
    %694 = vmatprep.subr.mxu0 0.0
    %695 = vmatpush1.msra.mxu0 0.0
    %696 = vmatprep.subr.mxu0 0.0
    %697 = vmatpush1.msra.mxu0 0.0
    %698 = vmatprep.subr.mxu0 0.0
    %699 = vmatpush1.msra.mxu0 0.0
    %700 = vmatprep.subr.mxu0 0.0
    %701 = vmatpush1.msra.mxu0 0.0
    %702 = vmatprep.subr.mxu0 0.0
    %703 = vmatpush1.msra.mxu0 0.0
    %704 = vmatprep.subr.mxu0 0.0
    %705 = vmatpush1.msra.mxu0 0.0
    %706 = vmatprep.subr.mxu0 0.0
    %707 = vmatpush1.msra.mxu0 0.0
    %708 = vmatprep.subr.mxu0 0.0
    %709 = vmatpush1.msra.mxu0 0.0
    %710 = vmatprep.subr.mxu0 0.0
    %711 = vmatpush1.msra.mxu0 0.0
    %712 = vmatprep.subr.mxu0 0.0
    %713 = vmatpush1.msra.mxu0 0.0
    %714 = vmatprep.subr.mxu0 0.0
    %715 = vmatpush1.msra.mxu0 0.0
    %716 = vmatprep.subr.mxu0 0.0
    %717 = vmatpush1.msra.mxu0 0.0
    %718 = vmatprep.mubr.f32.mxu0 0.0
    %719 = vmatmul.mubr.f32.gmra.mrb[0].mxu0 %v652
    %v720 = vpop.f32.mrb[0].mxu0
    %v721 = vadd.f32 0.0, %v720
    %v722 = vpop.f32.mrb[0].mxu0
    %723 = vdwg.mxu0
    %v725 = vrot.slane %v721, 6
    %v727 = vadd.f32 %v249, %v725
    %v728 = vtanh.pop %v727
    %v730 = vrot.slane %v728, 2
    %v732 = vadd.f32 %v650, %v730
    %v733 = vsel %vm170, %v730, 0
    %735 = vmatprep.subr.mxu0 0.0
    %736 = vmatpush1.msra.mxu0 %v252
    %737 = vmatprep.subr.mxu0 0.0
    %738 = vmatpush1.msra.mxu0 %v253
    %739 = vmatprep.subr.mxu0 0.0
    %740 = vmatpush1.msra.mxu0 %v254
    %741 = vmatprep.subr.mxu0 0.0
    %742 = vmatpush1.msra.mxu0 %v255
    %743 = vmatprep.subr.mxu0 0.0
    %744 = vmatpush1.msra.mxu0 0.0
    %745 = vmatprep.subr.mxu0 0.0
    %746 = vmatpush1.msra.mxu0 0.0
    %747 = vmatprep.subr.mxu0 0.0
    %748 = vmatpush1.msra.mxu0 0.0
    %749 = vmatprep.subr.mxu0 0.0
    %750 = vmatpush1.msra.mxu0 0.0
    %751 = vmatprep.subr.mxu0 0.0
    %752 = vmatpush1.msra.mxu0 0.0
    %753 = vmatprep.subr.mxu0 0.0
    %754 = vmatpush1.msra.mxu0 0.0
    %755 = vmatprep.subr.mxu0 0.0
    %756 = vmatpush1.msra.mxu0 0.0
    %757 = vmatprep.subr.mxu0 0.0
    %758 = vmatpush1.msra.mxu0 0.0
    %759 = vmatprep.subr.mxu0 0.0
    %760 = vmatpush1.msra.mxu0 0.0
    %761 = vmatprep.subr.mxu0 0.0
    %762 = vmatpush1.msra.mxu0 0.0
    %763 = vmatprep.subr.mxu0 0.0
    %764 = vmatpush1.msra.mxu0 0.0
    %765 = vmatprep.subr.mxu0 0.0
    %766 = vmatpush1.msra.mxu0 0.0
    %767 = vmatprep.subr.mxu0 0.0
    %768 = vmatpush1.msra.mxu0 0.0
    %769 = vmatprep.subr.mxu0 0.0
    %770 = vmatpush1.msra.mxu0 0.0
    %771 = vmatprep.subr.mxu0 0.0
    %772 = vmatpush1.msra.mxu0 0.0
    %773 = vmatprep.subr.mxu0 0.0
    %774 = vmatpush1.msra.mxu0 0.0
    %775 = vmatprep.subr.mxu0 0.0
    %776 = vmatpush1.msra.mxu0 0.0
    %777 = vmatprep.subr.mxu0 0.0
    %778 = vmatpush1.msra.mxu0 0.0
    %779 = vmatprep.subr.mxu0 0.0
    %780 = vmatpush1.msra.mxu0 0.0
    %781 = vmatprep.subr.mxu0 0.0
    %782 = vmatpush1.msra.mxu0 0.0
    %783 = vmatprep.subr.mxu0 0.0
    %784 = vmatpush1.msra.mxu0 0.0
    %785 = vmatprep.subr.mxu0 0.0
    %786 = vmatpush1.msra.mxu0 0.0
    %787 = vmatprep.subr.mxu0 0.0
    %788 = vmatpush1.msra.mxu0 0.0
    %789 = vmatprep.subr.mxu0 0.0
    %790 = vmatpush1.msra.mxu0 0.0
    %791 = vmatprep.subr.mxu0 0.0
    %792 = vmatpush1.msra.mxu0 0.0
    %793 = vmatprep.subr.mxu0 0.0
    %794 = vmatpush1.msra.mxu0 0.0
    %795 = vmatprep.subr.mxu0 0.0
    %796 = vmatpush1.msra.mxu0 0.0
    %797 = vmatprep.subr.mxu0 0.0
    %798 = vmatpush1.msra.mxu0 0.0
    %799 = vmatprep.mubr.f32.mxu0 0.0
    %800 = vmatmul.mubr.f32.gmra.mrb[0].mxu0 %v733
    %v801 = vpop.f32.mrb[0].mxu0
    %v802 = vadd.f32 0.0, %v801
    %v803 = vpop.f32.mrb[0].mxu0
    %804 = vdwg.mxu0
    %v806 = vrot.slane %v802, 4
    %v808 = vadd.f32 %v249, %v806
    %v809 = vtanh.pop %v808
    %v811 = vrot.slane %v809, 4
    %v813 = vadd.f32 %v732, %v811
    %v814 = vsel %vm170, %v811, 0
    %816 = vmatprep.subr.mxu0 0.0
    %817 = vmatpush1.msra.mxu0 %v252
    %818 = vmatprep.subr.mxu0 0.0
    %819 = vmatpush1.msra.mxu0 %v253
    %820 = vmatprep.subr.mxu0 0.0
    %821 = vmatpush1.msra.mxu0 %v254
    %822 = vmatprep.subr.mxu0 0.0
    %823 = vmatpush1.msra.mxu0 %v255
    %824 = vmatprep.subr.mxu0 0.0
    %825 = vmatpush1.msra.mxu0 0.0
    %826 = vmatprep.subr.mxu0 0.0
    %827 = vmatpush1.msra.mxu0 0.0
    %828 = vmatprep.subr.mxu0 0.0
    %829 = vmatpush1.msra.mxu0 0.0
    %830 = vmatprep.subr.mxu0 0.0
    %831 = vmatpush1.msra.mxu0 0.0
    %832 = vmatprep.subr.mxu0 0.0
    %833 = vmatpush1.msra.mxu0 0.0
    %834 = vmatprep.subr.mxu0 0.0
    %835 = vmatpush1.msra.mxu0 0.0
    %836 = vmatprep.subr.mxu0 0.0
    %837 = vmatpush1.msra.mxu0 0.0
    %838 = vmatprep.subr.mxu0 0.0
    %839 = vmatpush1.msra.mxu0 0.0
    %840 = vmatprep.subr.mxu0 0.0
    %841 = vmatpush1.msra.mxu0 0.0
    %842 = vmatprep.subr.mxu0 0.0
    %843 = vmatpush1.msra.mxu0 0.0
    %844 = vmatprep.subr.mxu0 0.0
    %845 = vmatpush1.msra.mxu0 0.0
    %846 = vmatprep.subr.mxu0 0.0
    %847 = vmatpush1.msra.mxu0 0.0
    %848 = vmatprep.subr.mxu0 0.0
    %849 = vmatpush1.msra.mxu0 0.0
    %850 = vmatprep.subr.mxu0 0.0
    %851 = vmatpush1.msra.mxu0 0.0
    %852 = vmatprep.subr.mxu0 0.0
    %853 = vmatpush1.msra.mxu0 0.0
    %854 = vmatprep.subr.mxu0 0.0
    %855 = vmatpush1.msra.mxu0 0.0
    %856 = vmatprep.subr.mxu0 0.0
    %857 = vmatpush1.msra.mxu0 0.0
    %858 = vmatprep.subr.mxu0 0.0
    %859 = vmatpush1.msra.mxu0 0.0
    %860 = vmatprep.subr.mxu0 0.0
    %861 = vmatpush1.msra.mxu0 0.0
    %862 = vmatprep.subr.mxu0 0.0
    %863 = vmatpush1.msra.mxu0 0.0
    %864 = vmatprep.subr.mxu0 0.0
    %865 = vmatpush1.msra.mxu0 0.0
    %866 = vmatprep.subr.mxu0 0.0
    %867 = vmatpush1.msra.mxu0 0.0
    %868 = vmatprep.subr.mxu0 0.0
    %869 = vmatpush1.msra.mxu0 0.0
    %870 = vmatprep.subr.mxu0 0.0
    %871 = vmatpush1.msra.mxu0 0.0
    %872 = vmatprep.subr.mxu0 0.0
    %873 = vmatpush1.msra.mxu0 0.0
    %874 = vmatprep.subr.mxu0 0.0
    %875 = vmatpush1.msra.mxu0 0.0
    %876 = vmatprep.subr.mxu0 0.0
    %877 = vmatpush1.msra.mxu0 0.0
    %878 = vmatprep.subr.mxu0 0.0
    %879 = vmatpush1.msra.mxu0 0.0
    %880 = vmatprep.mubr.f32.mxu0 0.0
    %881 = vmatmul.mubr.f32.gmra.mrb[0].mxu0 %v814
    %v882 = vpop.f32.mrb[0].mxu0
    %v883 = vadd.f32 0.0, %v882
    %v884 = vpop.f32.mrb[0].mxu0
    %885 = vdwg.mxu0
    %v887 = vrot.slane %v883, 2
    %v889 = vadd.f32 %v249, %v887
    %v890 = vtanh.pop %v889
    %v892 = vrot.slane %v890, 6
    %v894 = vadd.f32 %v813, %v892
    %v895 = vmul.f32 %v894, 0.125
    %v896 = vld [vmem:[%s5] sm:$0xff]
    %v897 = vld [vmem:[%s5 + $0x8] sm:$0xff]
    %v898 = vld [vmem:[%s5 + $0x10] sm:$0xff]
    %v899 = vld [vmem:[%s5 + $0x18] sm:$0xff]
    %v900 = vld [vmem:[%s6] sm:$0x1]
    %v902 = vlaneseq
    %v903 = vshrl.u32 %v902, 7
    %v904 = vsub.s32 0, %v903
    %v905 = vrot.slane %v900, %v904
    %v908 = vsel %vm170, %v895, 0
    %910 = vmatprep.subr.mxu0 0.0
    %911 = vmatpush1.msra.mxu0 %v896
    %912 = vmatprep.subr.mxu0 0.0
    %913 = vmatpush1.msra.mxu0 %v897
    %914 = vmatprep.subr.mxu0 0.0
    %915 = vmatpush1.msra.mxu0 %v898
    %916 = vmatprep.subr.mxu0 0.0
    %917 = vmatpush1.msra.mxu0 %v899
    %918 = vmatprep.subr.mxu0 0.0
    %919 = vmatpush1.msra.mxu0 0.0
    %920 = vmatprep.subr.mxu0 0.0
    %921 = vmatpush1.msra.mxu0 0.0
    %922 = vmatprep.subr.mxu0 0.0
    %923 = vmatpush1.msra.mxu0 0.0
    %924 = vmatprep.subr.mxu0 0.0
    %925 = vmatpush1.msra.mxu0 0.0
    %926 = vmatprep.subr.mxu0 0.0
    %927 = vmatpush1.msra.mxu0 0.0
    %928 = vmatprep.subr.mxu0 0.0
    %929 = vmatpush1.msra.mxu0 0.0
    %930 = vmatprep.subr.mxu0 0.0
    %931 = vmatpush1.msra.mxu0 0.0
    %932 = vmatprep.subr.mxu0 0.0
    %933 = vmatpush1.msra.mxu0 0.0
    %934 = vmatprep.subr.mxu0 0.0
    %935 = vmatpush1.msra.mxu0 0.0
    %936 = vmatprep.subr.mxu0 0.0
    %937 = vmatpush1.msra.mxu0 0.0
    %938 = vmatprep.subr.mxu0 0.0
    %939 = vmatpush1.msra.mxu0 0.0
    %940 = vmatprep.subr.mxu0 0.0
    %941 = vmatpush1.msra.mxu0 0.0
    %942 = vmatprep.subr.mxu0 0.0
    %943 = vmatpush1.msra.mxu0 0.0
    %944 = vmatprep.subr.mxu0 0.0
    %945 = vmatpush1.msra.mxu0 0.0
    %946 = vmatprep.subr.mxu0 0.0
    %947 = vmatpush1.msra.mxu0 0.0
    %948 = vmatprep.subr.mxu0 0.0
    %949 = vmatpush1.msra.mxu0 0.0
    %950 = vmatprep.subr.mxu0 0.0
    %951 = vmatpush1.msra.mxu0 0.0
    %952 = vmatprep.subr.mxu0 0.0
    %953 = vmatpush1.msra.mxu0 0.0
    %954 = vmatprep.subr.mxu0 0.0
    %955 = vmatpush1.msra.mxu0 0.0
    %956 = vmatprep.subr.mxu0 0.0
    %957 = vmatpush1.msra.mxu0 0.0
    %958 = vmatprep.subr.mxu0 0.0
    %959 = vmatpush1.msra.mxu0 0.0
    %960 = vmatprep.subr.mxu0 0.0
    %961 = vmatpush1.msra.mxu0 0.0
    %962 = vmatprep.subr.mxu0 0.0
    %963 = vmatpush1.msra.mxu0 0.0
    %964 = vmatprep.subr.mxu0 0.0
    %965 = vmatpush1.msra.mxu0 0.0
    %966 = vmatprep.subr.mxu0 0.0
    %967 = vmatpush1.msra.mxu0 0.0
    %968 = vmatprep.subr.mxu0 0.0
    %969 = vmatpush1.msra.mxu0 0.0
    %970 = vmatprep.subr.mxu0 0.0
    %971 = vmatpush1.msra.mxu0 0.0
    %972 = vmatprep.subr.mxu0 0.0
    %973 = vmatpush1.msra.mxu0 0.0
    %974 = vmatprep.mubr.f32.mxu0 0.0
    %975 = vmatmul.mubr.f32.gmra.mrb[0].mxu0 %v908
    %v976 = vpop.f32.mrb[0].mxu0
    %v977 = vadd.f32 %v905, %v976
    %v978 = vpop.f32.mrb[0].mxu0
    %979 = vdwg.mxu0
    %vm980 = vcmask 58368
    %981 = vst.msk [vmem:[#allocation7] sm:$0x3] %vm980, %v977
    // Predicated region
    $region38: #{tpu_custom_call.1} parent=1 // pred_check
      _
    $region39: #{tpu_custom_call.1} parent=1 // pred_check_branch
      %983 = sbr.rel (0) target = $region41
    $region40: #{tpu_custom_call.1} parent=1 // pred_region
      %s985 = ssub.s32 32, 32
      %986 = vsyncadd [#allocation4], %s985
      %s988 = sshll.u32 [#allocation7], 4
      %s989 = int_to_ptr.vmem [resolvable:$true] %s988
      %991 = dma.vmem_to_hbm [thread:$0]  %s989, 32, %s7, [#allocation4]
    $region41: #{tpu_custom_call.1} parent=1 // pred_fallthru
      _
    // Predicated region
    $region42: #{tpu_custom_call.1} parent=1 // pred_check
      _
    $region43: #{tpu_custom_call.1} parent=1 // pred_check_branch
      %993 = sbr.rel (0) target = $region45
    $region44: #{tpu_custom_call.1} parent=1 // pred_region
      %994 = dma.done [#allocation4], 32
    $region45: #{tpu_custom_call.1} parent=1 // pred_fallthru
      _
    %995 = vsyncpa [#allocation3], 1
    %996 = vsyncpa [#allocation6], 1
    %997 = vsyncpa [#allocation4], 1

</llo_original>
